<compile_context>
chip_gen: v5e
topology: v5e:2x2
jax: 0.10.0
libtpu: 0.0.40
codegen_flags: <defaults>
</compile_context>

<pallas_src>
import math
from functools import partial

import jax
import jax.numpy as jnp
from jax.experimental import pallas as pl
from jax.experimental.pallas import tpu as pltpu


def _cdiv(a, b):
    return -(-a // b)


def _round_up(x, m):
    return _cdiv(x, m) * m


def _styled_conv_kernel(w_ref, x_hbm_ref, noise_ref, bias_ref, out_ref,
                        xbuf_ref, xstack_ref, dma_sem, *,
                        k, pad, Wp, halo, tile_n, w_full, c_pad,
                        negative_slope, act_scale):
    """One (batch, spatial tile, out-channel tile) grid step.

    w_ref     : (TILE_O, k*k*C_pad)          bf16  per-batch mod+demod weight
    x_hbm_ref : (B, C_pad, n_total + 2*halo) bf16  flat padded x (ANY space)
    noise_ref : (1, TILE_N)                  f32   noise, pre-scaled by weight
    bias_ref  : (TILE_O, 1)                  f32   FusedLeakyReLU bias
    out_ref   : (TILE_O, TILE_N)             out dtype
    xbuf_ref  : (C_pad, TILE_N + 2*halo)     bf16  VMEM scratch (halo'd slab)
    xstack_ref: (k*k*C_pad, TILE_N)          bf16  VMEM scratch (stacked operand)
    """
    b = pl.program_id(0)
    j = pl.program_id(1)
    i = pl.program_id(2)

    # The input slab depends only on (b, j); the out-channel axis i is the
    # innermost grid axis, so fetch + stack once per (b, j), reuse across i.
    @pl.when(i == 0)
    def _():
        col0 = pl.multiple_of(j * tile_n, 128)
        cp = pltpu.make_async_copy(
            x_hbm_ref.at[b, :, pl.ds(col0, w_full)], xbuf_ref, dma_sem)
        cp.start()
        cp.wait()
        # Stack the k*k shifted views so ONE matmul with K = k*k*C_pad does the
        # whole conv (no per-tap accumulator read-modify-write passes).
        for t in range(k * k):
            dy, dx = t // k, t % k
            start = halo + (dy - pad) * Wp + (dx - pad)
            xstack_ref[t * c_pad:(t + 1) * c_pad, :] = \
                xbuf_ref[:, start:start + tile_n]

    # Single big-K MXU matmul, f32 accumulation.
    out = jnp.dot(w_ref[...], xstack_ref[...],
                  preferred_element_type=jnp.float32)
    out = out + noise_ref[...]                       # NoiseInjection (pre-scaled)
    out = out + bias_ref[...]                        # FusedLeakyReLU bias
    out = jnp.where(out >= 0.0, out, negative_slope * out) * act_scale
    out_ref[...] = out.astype(out_ref.dtype)


def styled_conv(x, style, params, *, kernel_size=3, demodulate=True, noise=None,
                max_tile_n=1024, matmul_dtype=jnp.bfloat16,
                out_dtype=jnp.bfloat16):
    """StyledConv forward. x: (B, C, H, W), style: (B, S), noise: (B,1,H,W)|None."""
    B, C, H, W = x.shape
    S = style.shape[1]
    k = kernel_size
    kk = k * k
    O = params["conv_weight"].shape[0]
    p = k // 2
    Hp, Wp = H + 2 * p, W + 2 * p
    eps = 1e-8

    conv_scale = 1.0 / math.sqrt(C * kk)
    mod_scale = 1.0 / math.sqrt(S)       # EqualLinear scale, lr_mul = 1

    # --- tiny per-batch math (EqualLinear + mod + demod folded into weights) ---
    s = (style.astype(jnp.float32) @ (params["mod_weight"].astype(jnp.float32).T
                                      * mod_scale)
         + params["mod_bias"].astype(jnp.float32))                       # (B, C)
    w = conv_scale * params["conv_weight"].astype(jnp.float32)           # (O,C,k,k)
    w_b = w[None] * s[:, None, :, None, None]                            # (B,O,C,k,k)
    if demodulate:
        demod = jax.lax.rsqrt(jnp.sum(w_b * w_b, axis=(2, 3, 4)) + eps)  # (B, O)
        w_b = w_b * demod[:, :, None, None, None]

    # Pad channels so every tap lands on an aligned sublane offset in the
    # stacked matmul operand (real StyleGAN2 layers already satisfy this).
    c_pad = _round_up(max(C, 1), 16)
    w_taps = jnp.pad(w_b.transpose(0, 1, 3, 4, 2),                       # (B,O,k,k,C)
                     ((0, 0), (0, 0), (0, 0), (0, 0), (0, c_pad - C)))
    w_taps = w_taps.reshape(B, O, kk * c_pad).astype(matmul_dtype)       # (B,O,kk*Cp)

    # --- tile geometry ---------------------------------------------------------
    n_spatial = Hp * Wp                                   # padded pixels / batch
    n_tiles = _cdiv(n_spatial, max_tile_n)
    tile_n = _round_up(_cdiv(n_spatial, n_tiles), 128)    # lane-dense
    n_total = n_tiles * tile_n
    halo = _round_up(p * Wp + p, 64)                      # 2*halo multiple of 128
    w_full = tile_n + 2 * halo
    tile_o = O
    for cand in (256, 128, 64, 32, 16, 8):
        if O % cand == 0:
            tile_o = cand
            break
    o_tiles = O // tile_o

    # --- large operands: one flat padded copy of x (no per-tile stacking) -----
    x_pad = jnp.pad(x.astype(matmul_dtype),
                    ((0, 0), (0, c_pad - C), (p, p), (p, p)))
    x_flat = jnp.pad(x_pad.reshape(B, c_pad, n_spatial),
                     ((0, 0), (0, 0), (halo, n_total + halo - n_spatial)))

    if noise is None:
        # NoiseInjection uses zeros when noise is None.
        noise_flat = jnp.zeros((B, 1, n_total), jnp.float32)
    else:
        nw = params["noise_weight"].reshape(()).astype(jnp.float32)
        noise_pad = jnp.pad(noise.reshape(B, 1, H, W).astype(jnp.float32) * nw,
                            ((0, 0), (0, 0), (p, p), (p, p)))
        noise_flat = jnp.pad(noise_pad.reshape(B, 1, n_spatial),
                             ((0, 0), (0, 0), (0, n_total - n_spatial)))

    bias_col = params["act_bias"].reshape(O, 1).astype(jnp.float32)

    # --- VMEM budget from actual buffer sizes ----------------------------------
    itm = jnp.dtype(matmul_dtype).itemsize
    out_itm = jnp.dtype(out_dtype).itemsize
    vmem_bytes = (2 * tile_o * kk * c_pad * itm      # weight double buffer
                  + c_pad * w_full * itm             # xbuf scratch
                  + kk * c_pad * tile_n * itm        # xstack scratch
                  + 2 * tile_o * tile_n * out_itm    # output double buffer
                  + 2 * tile_n * 4 + 2 * tile_o * 4  # noise / bias buffers
                  + 2 * tile_o * tile_n * 4)         # f32 matmul/epilogue temps
    vmem_limit = min(max(int(vmem_bytes * 1.5) + (2 << 20), 32 * 1024 * 1024),
                     100 * 1024 * 1024)

    kernel = partial(_styled_conv_kernel, k=k, pad=p, Wp=Wp, halo=halo,
                     tile_n=tile_n, w_full=w_full, c_pad=c_pad,
                     negative_slope=0.2, act_scale=2.0 ** 0.5)

    out_flat = pl.pallas_call(
        kernel,
        out_shape=jax.ShapeDtypeStruct((B, O, n_total), out_dtype),
        grid=(B, n_tiles, o_tiles),
        in_specs=[
            pl.BlockSpec((None, tile_o, kk * c_pad),
                         lambda b, j, i: (b, i, 0)),            # per-batch weights
            pl.BlockSpec(memory_space=pl.ANY),                  # flat padded x
            pl.BlockSpec((None, 1, tile_n),
                         lambda b, j, i: (b, 0, j)),            # pre-scaled noise
            pl.BlockSpec((tile_o, 1), lambda b, j, i: (i, 0)),  # act bias
        ],
        out_specs=pl.BlockSpec((None, tile_o, tile_n),
                               lambda b, j, i: (b, i, j)),
        scratch_shapes=[
            pltpu.VMEM((c_pad, w_full), matmul_dtype),          # halo'd slab
            pltpu.VMEM((kk * c_pad, tile_n), matmul_dtype),     # stacked operand
            pltpu.SemaphoreType.DMA(()),
        ],
        compiler_params=pltpu.CompilerParams(
            dimension_semantics=("parallel", "parallel", "arbitrary"),
            vmem_limit_bytes=vmem_limit),
    )(w_taps, x_flat, noise_flat, bias_col)

    out = out_flat[:, :, :n_spatial].reshape(B, O, Hp, Wp)
    return out[:, :, p:p + H, p:p + W]


def _reference_styled_conv(x, style, params, *, kernel_size=3, demodulate=True,
                           noise=None):
    """Pure-JAX reference matching the PyTorch fused ModulatedConv2d path."""
    B, C, H, W = x.shape
    S = style.shape[1]
    k = kernel_size
    O = params["conv_weight"].shape[0]
    conv_scale = 1.0 / math.sqrt(C * k * k)
    mod_scale = 1.0 / math.sqrt(S)

    s = style @ (params["mod_weight"] * mod_scale).T + params["mod_bias"]  # (B, C)
    w = conv_scale * params["conv_weight"][None] * s[:, None, :, None, None]
    if demodulate:
        demod = jax.lax.rsqrt(jnp.sum(w ** 2, axis=(2, 3, 4)) + 1e-8)
        w = w * demod[:, :, None, None, None]
    outs = []
    for b in range(B):
        o = jax.lax.conv_general_dilated(
            x[b:b + 1], w[b], window_strides=(1, 1),
            padding=[(k // 2, k // 2)] * 2,
            dimension_numbers=("NCHW", "OIHW", "NCHW"),
            precision=jax.lax.Precision.HIGHEST)
        outs.append(o)
    out = jnp.concatenate(outs, axis=0)                         # (B, O, H, W)
    if noise is None:
        noise = jnp.zeros((B, 1, H, W), jnp.float32)
    out = out + params["noise_weight"] * noise
    out = out + params["act_bias"][None, :, None, None]
    out = jnp.where(out >= 0.0, out, 0.2 * out) * (2.0 ** 0.5)
    return out


if __name__ == "__main__":
    # Small shapes consistent with StyledConv: batch=2, in_c=4, out_c=8, k=3,
    # style_dim=16, spatial=16x16.
    B, C, O, K, S, H, W = 2, 4, 8, 3, 16, 16, 16

    key = jax.random.PRNGKey(0)
    k_x, k_s, k_w, k_mw, k_ab, k_nz = jax.random.split(key, 6)

    x = jax.random.normal(k_x, (B, C, H, W), jnp.float32)
    style = jax.random.normal(k_s, (B, S), jnp.float32)
    noise = jax.random.normal(k_nz, (B, 1, H, W), jnp.float32)

    params = {
        "conv_weight": jax.random.normal(k_w, (O, C, K, K), jnp.float32),
        "mod_weight": jax.random.normal(k_mw, (C, S), jnp.float32),
        "mod_bias": jnp.ones((C,), jnp.float32),              # bias_init=1
        "noise_weight": jnp.array([0.3], jnp.float32),        # NoiseInjection.weight
        "act_bias": 0.1 * jax.random.normal(k_ab, (O,), jnp.float32),
    }

    out = styled_conv(x, style, params, kernel_size=K, demodulate=True,
                      noise=noise)
    out = jax.block_until_ready(out)

    ref = _reference_styled_conv(x, style, params, kernel_size=K,
                                 demodulate=True, noise=noise)
    assert out.shape == (B, O, H, W)
    err = float(jnp.max(jnp.abs(out.astype(jnp.float32) - ref)))
    scale = float(jnp.max(jnp.abs(ref)))
    # bf16 matmul operands + bf16 output vs f32 reference: ~3% of full scale.
    assert err <= 3e-2 * max(scale, 1.0), (err, scale)

    print("KERNEL_OK")
</pallas_src>

<mosaic_0001>
module attributes {stable_mosaic.version = 11 : i64} {
  func.func @_styled_conv_kernel(%arg0: i32, %arg1: i32, %arg2: i32, %arg3: memref<1x8x144xbf16, #tpu.memory_space<vmem>>, %arg4: memref<2x16x512xbf16, #tpu.memory_space<any>>, %arg5: memref<1x1x384xf32, #tpu.memory_space<vmem>>, %arg6: memref<8x1xf32, #tpu.memory_space<vmem>>, %arg7: memref<1x8x384xbf16, #tpu.memory_space<vmem>>, %arg8: memref<16x512xbf16, #tpu.memory_space<vmem>>, %arg9: memref<144x384xbf16, #tpu.memory_space<vmem>>, %arg10: memref<!tpu.dma_semaphore, #tpu.memory_space<semaphore_mem>>) attributes {dimension_semantics = [#tpu.dimension_semantics<parallel>, #tpu.dimension_semantics<parallel>, #tpu.dimension_semantics<arbitrary>], iteration_bounds = array<i64: 2, 1, 1>, scalar_prefetch = 0 : i64, scratch_operands = 3 : i64, tpu.core_type = #tpu.core_type<tc>, window_params = [{transform_indices = @transform_0, window_bounds = array<i64: 1, 8, 144>}, {}, {transform_indices = @transform_2, window_bounds = array<i64: 1, 1, 384>}, {transform_indices = @transform_3, window_bounds = array<i64: 8, 1>}, {transform_indices = @transform_4, window_bounds = array<i64: 1, 8, 384>}]} {
    %c0_i32 = arith.constant 0 : i32
    %0 = arith.cmpi eq, %arg2, %c0_i32 : i32
    %1 = arith.extui %0 : i1 to i32
    %c0_i32_0 = arith.constant 0 : i32
    %2 = arith.cmpi ne, %1, %c0_i32_0 : i32
    scf.if %2 {
      %c384_i32 = arith.constant 384 : i32
      %25 = arith.muli %arg1, %c384_i32 : i32
      %26 = tpu.assume_multiple %25, 128 : i32
      %c0_i32_16 = arith.constant 0 : i32
      %27 = tpu.memref_slice %arg4[%arg0, %c0_i32_16, %26] : memref<2x16x512xbf16, #tpu.memory_space<any>> -> memref<1x16x512xbf16, #tpu.memory_space<any>>
      %28 = tpu.memref_squeeze %27 : memref<1x16x512xbf16, #tpu.memory_space<any>> -> memref<16x512xbf16, #tpu.memory_space<any>>
      tpu.enqueue_dma source(%28 : memref<16x512xbf16, #tpu.memory_space<any>>) target(%arg8 : memref<16x512xbf16, #tpu.memory_space<vmem>>) target_semaphore(%arg10 : memref<!tpu.dma_semaphore, #tpu.memory_space<semaphore_mem>>)
      %c0_i32_17 = arith.constant 0 : i32
      %29 = tpu.memref_slice %arg4[%arg0, %c0_i32_17, %26] : memref<2x16x512xbf16, #tpu.memory_space<any>> -> memref<1x16x512xbf16, #tpu.memory_space<any>>
      %30 = tpu.memref_squeeze %29 : memref<1x16x512xbf16, #tpu.memory_space<any>> -> memref<16x512xbf16, #tpu.memory_space<any>>
      tpu.wait_dma2 semaphore(%arg10 : memref<!tpu.dma_semaphore, #tpu.memory_space<semaphore_mem>>) src(%30 : memref<16x512xbf16, #tpu.memory_space<any>>) dst(%arg8 : memref<16x512xbf16, #tpu.memory_space<vmem>>)
      %c0_18 = arith.constant 0 : index
      %c45 = arith.constant 45 : index
      %31 = vector.load %arg8[%c0_18, %c45] : memref<16x512xbf16, #tpu.memory_space<vmem>>, vector<16x384xbf16>
      %c0_19 = arith.constant 0 : index
      %c0_20 = arith.constant 0 : index
      %32 = vector.load %arg9[%c0_19, %c0_20] : memref<144x384xbf16, #tpu.memory_space<vmem>>, vector<16x384xbf16>
      tpu.vector_store %arg9[%c0_19, %c0_20], %31 {strides = array<i32>} : memref<144x384xbf16, #tpu.memory_space<vmem>>, vector<16x384xbf16>,
      %c0_21 = arith.constant 0 : index
      %c46 = arith.constant 46 : index
      %33 = vector.load %arg8[%c0_21, %c46] : memref<16x512xbf16, #tpu.memory_space<vmem>>, vector<16x384xbf16>
      %c16 = arith.constant 16 : index
      %c0_22 = arith.constant 0 : index
      %34 = vector.load %arg9[%c16, %c0_22] : memref<144x384xbf16, #tpu.memory_space<vmem>>, vector<16x384xbf16>
      tpu.vector_store %arg9[%c16, %c0_22], %33 {strides = array<i32>} : memref<144x384xbf16, #tpu.memory_space<vmem>>, vector<16x384xbf16>,
      %c0_23 = arith.constant 0 : index
      %c47 = arith.constant 47 : index
      %35 = vector.load %arg8[%c0_23, %c47] : memref<16x512xbf16, #tpu.memory_space<vmem>>, vector<16x384xbf16>
      %c32 = arith.constant 32 : index
      %c0_24 = arith.constant 0 : index
      %36 = vector.load %arg9[%c32, %c0_24] : memref<144x384xbf16, #tpu.memory_space<vmem>>, vector<16x384xbf16>
      tpu.vector_store %arg9[%c32, %c0_24], %35 {strides = array<i32>} : memref<144x384xbf16, #tpu.memory_space<vmem>>, vector<16x384xbf16>,
      %c0_25 = arith.constant 0 : index
      %c63 = arith.constant 63 : index
      %37 = vector.load %arg8[%c0_25, %c63] : memref<16x512xbf16, #tpu.memory_space<vmem>>, vector<16x384xbf16>
      %c48 = arith.constant 48 : index
      %c0_26 = arith.constant 0 : index
      %38 = vector.load %arg9[%c48, %c0_26] : memref<144x384xbf16, #tpu.memory_space<vmem>>, vector<16x384xbf16>
      tpu.vector_store %arg9[%c48, %c0_26], %37 {strides = array<i32>} : memref<144x384xbf16, #tpu.memory_space<vmem>>, vector<16x384xbf16>,
      %c0_27 = arith.constant 0 : index
      %c64 = arith.constant 64 : index
      %39 = vector.load %arg8[%c0_27, %c64] : memref<16x512xbf16, #tpu.memory_space<vmem>>, vector<16x384xbf16>
      %c64_28 = arith.constant 64 : index
      %c0_29 = arith.constant 0 : index
      %40 = vector.load %arg9[%c64_28, %c0_29] : memref<144x384xbf16, #tpu.memory_space<vmem>>, vector<16x384xbf16>
      tpu.vector_store %arg9[%c64_28, %c0_29], %39 {strides = array<i32>} : memref<144x384xbf16, #tpu.memory_space<vmem>>, vector<16x384xbf16>,
      %c0_30 = arith.constant 0 : index
      %c65 = arith.constant 65 : index
      %41 = vector.load %arg8[%c0_30, %c65] : memref<16x512xbf16, #tpu.memory_space<vmem>>, vector<16x384xbf16>
      %c80 = arith.constant 80 : index
      %c0_31 = arith.constant 0 : index
      %42 = vector.load %arg9[%c80, %c0_31] : memref<144x384xbf16, #tpu.memory_space<vmem>>, vector<16x384xbf16>
      tpu.vector_store %arg9[%c80, %c0_31], %41 {strides = array<i32>} : memref<144x384xbf16, #tpu.memory_space<vmem>>, vector<16x384xbf16>,
      %c0_32 = arith.constant 0 : index
      %c81 = arith.constant 81 : index
      %43 = vector.load %arg8[%c0_32, %c81] : memref<16x512xbf16, #tpu.memory_space<vmem>>, vector<16x384xbf16>
      %c96 = arith.constant 96 : index
      %c0_33 = arith.constant 0 : index
      %44 = vector.load %arg9[%c96, %c0_33] : memref<144x384xbf16, #tpu.memory_space<vmem>>, vector<16x384xbf16>
      tpu.vector_store %arg9[%c96, %c0_33], %43 {strides = array<i32>} : memref<144x384xbf16, #tpu.memory_space<vmem>>, vector<16x384xbf16>,
      %c0_34 = arith.constant 0 : index
      %c82 = arith.constant 82 : index
      %45 = vector.load %arg8[%c0_34, %c82] : memref<16x512xbf16, #tpu.memory_space<vmem>>, vector<16x384xbf16>
      %c112 = arith.constant 112 : index
      %c0_35 = arith.constant 0 : index
      %46 = vector.load %arg9[%c112, %c0_35] : memref<144x384xbf16, #tpu.memory_space<vmem>>, vector<16x384xbf16>
      tpu.vector_store %arg9[%c112, %c0_35], %45 {strides = array<i32>} : memref<144x384xbf16, #tpu.memory_space<vmem>>, vector<16x384xbf16>,
      %c0_36 = arith.constant 0 : index
      %c83 = arith.constant 83 : index
      %47 = vector.load %arg8[%c0_36, %c83] : memref<16x512xbf16, #tpu.memory_space<vmem>>, vector<16x384xbf16>
      %c128 = arith.constant 128 : index
      %c0_37 = arith.constant 0 : index
      %48 = vector.load %arg9[%c128, %c0_37] : memref<144x384xbf16, #tpu.memory_space<vmem>>, vector<16x384xbf16>
      tpu.vector_store %arg9[%c128, %c0_37], %47 {strides = array<i32>} : memref<144x384xbf16, #tpu.memory_space<vmem>>, vector<16x384xbf16>,
    } else {
    }
    %c0 = arith.constant 0 : index
    %c0_1 = arith.constant 0 : index
    %c0_2 = arith.constant 0 : index
    %3 = vector.load %arg3[%c0, %c0_1, %c0_2] : memref<1x8x144xbf16, #tpu.memory_space<vmem>>, vector<1x8x144xbf16>
    %4 = vector.shape_cast %3 : vector<1x8x144xbf16> to vector<8x144xbf16>
    %c0_3 = arith.constant 0 : index
    %c0_4 = arith.constant 0 : index
    %5 = vector.load %arg9[%c0_3, %c0_4] : memref<144x384xbf16, #tpu.memory_space<vmem>>, vector<144x384xbf16>
    %cst = arith.constant dense<0.000000e+00> : vector<8x384xf32>
    %6 = tpu.matmul %4, %5, %cst {dimension_numbers = #tpu.dot_dimension_numbers<[1], [0], [0], [1], [0, 0, 1, 1], [], []>} : vector<8x144xbf16>, vector<144x384xbf16>, vector<8x384xf32> -> vector<8x384xf32>
    %c0_5 = arith.constant 0 : index
    %c0_6 = arith.constant 0 : index
    %c0_7 = arith.constant 0 : index
    %7 = vector.load %arg5[%c0_5, %c0_6, %c0_7] : memref<1x1x384xf32, #tpu.memory_space<vmem>>, vector<1x1x384xf32>
    %8 = vector.shape_cast %7 : vector<1x1x384xf32> to vector<1x384xf32>
    %9 = vector.broadcast %8 : vector<1x384xf32> to vector<8x384xf32>
    %10 = arith.addf %6, %9 : vector<8x384xf32>
    %c0_8 = arith.constant 0 : index
    %c0_9 = arith.constant 0 : index
    %11 = vector.load %arg6[%c0_8, %c0_9] : memref<8x1xf32, #tpu.memory_space<vmem>>, vector<8x1xf32>
    %12 = vector.broadcast %11 : vector<8x1xf32> to vector<8x384xf32>
    %13 = arith.addf %10, %12 : vector<8x384xf32>
    %cst_10 = arith.constant 0.000000e+00 : f32
    %14 = vector.broadcast %cst_10 : f32 to vector<8x384xf32>
    %15 = arith.cmpf oge, %13, %14 : vector<8x384xf32>
    %cst_11 = arith.constant 2.000000e-01 : f32
    %16 = vector.broadcast %cst_11 : f32 to vector<8x384xf32>
    %17 = arith.mulf %16, %13 : vector<8x384xf32>
    %18 = arith.select %15, %13, %17 : vector<8x384xi1>, vector<8x384xf32>
    %cst_12 = arith.constant 1.41421354 : f32
    %19 = vector.broadcast %cst_12 : f32 to vector<8x384xf32>
    %20 = arith.mulf %18, %19 : vector<8x384xf32>
    %21 = arith.truncf %20 : vector<8x384xf32> to vector<8x384xbf16>
    %c0_13 = arith.constant 0 : index
    %c0_14 = arith.constant 0 : index
    %c0_15 = arith.constant 0 : index
    %22 = vector.load %arg7[%c0_13, %c0_14, %c0_15] : memref<1x8x384xbf16, #tpu.memory_space<vmem>>, vector<1x8x384xbf16>
    %23 = vector.shape_cast %22 : vector<1x8x384xbf16> to vector<8x384xbf16>
    %24 = vector.shape_cast %21 : vector<8x384xbf16> to vector<1x8x384xbf16>
    tpu.vector_store %arg7[%c0_13, %c0_14, %c0_15], %24 {strides = array<i32>} : memref<1x8x384xbf16, #tpu.memory_space<vmem>>, vector<1x8x384xbf16>,
    return
  }
  func.func @transform_0(%arg0: i32, %arg1: i32, %arg2: i32) -> (i32, i32, i32) {
    %c0_i32 = arith.constant 0 : i32
    %c0_i32_0 = arith.constant 0 : i32
    return %arg0, %arg2, %c0_i32 : i32, i32, i32
  }
  func.func @transform_2(%arg0: i32, %arg1: i32, %arg2: i32) -> (i32, i32, i32) {
    %c0_i32 = arith.constant 0 : i32
    %c0_i32_0 = arith.constant 0 : i32
    return %arg0, %c0_i32, %arg1 : i32, i32, i32
  }
  func.func @transform_3(%arg0: i32, %arg1: i32, %arg2: i32) -> (i32, i32) {
    %c0_i32 = arith.constant 0 : i32
    %c0_i32_0 = arith.constant 0 : i32
    return %arg2, %c0_i32 : i32, i32
  }
  func.func @transform_4(%arg0: i32, %arg1: i32, %arg2: i32) -> (i32, i32, i32) {
    %c0_i32 = arith.constant 0 : i32
    return %arg0, %arg2, %arg1 : i32, i32, i32
  }
}

</mosaic_0001>

<llo_original>
// kernel: tpu_custom_call.1
$region0: #{tpu_custom_call.1}
  #allocation0 [shape = 'u32[]', space=smem, size = 0x4, offset = 0x4, fixed_abs, tag = 'smem constant byte address 0x4 - core index']
  #allocation1 [shape = 'u32[72,128]{1,0:T(1,128)}', space=vmem, size = 0x9000, scoped, tag = 'internal scratch']
  #allocation2 [shape = 'bf16[16,512]{1,0:T(8,128)(2,1)}', space=vmem, size = 0x4000, scoped, tag = 'scratch operand']
  #allocation3 [shape = 'bf16[144,384]{1,0:T(8,128)(2,1)}', space=vmem, size = 0x1b000, scoped, tag = 'scratch operand']
  #allocation4 [shape = 's32[1]{0}', space=sflag, size = 0x4, scoped, tag = 'scratch operand']
  #allocation9 [shape = 's32[]', space=sflag, size = 0x4, offset = 0, fixed_abs, tag = 'sflag constant byte address 0x0 - dummy sync flag']
  #allocation10 [shape = 's32[]', space=sflag, size = 0x4, offset = 0, fixed_abs, tag = 'sflag constant byte address 0x0 - dummy sync flag']
  #allocation11 [shape = 'u32[]', space=smem, size = 0x4, offset = 0x44, fixed_abs, tag = 'smem constant byte address 0x44 - assertion arg 0']
  #allocation12 [shape = 'u32[]', space=smem, size = 0x4, offset = 0x48, fixed_abs, tag = 'smem constant byte address 0x48 - assertion arg 1']
  %s0 = inlined_call_operand.hbm [shape: bf16[2,8,144], index: 0, kind: input, shape index: {}]
  %s1 = inlined_call_operand.hbm [shape: bf16[2,16,512], index: 1, kind: input, shape index: {}]
  %s2 = inlined_call_operand.vmem [shape: f32[2,1,384], index: 2, kind: input, shape index: {}]
  %s3 = inlined_call_operand.vmem [shape: f32[8,1], index: 3, kind: input, shape index: {}]
  %s4 = inlined_call_operand.hbm [shape: bf16[2,8,384], index: 4, kind: output, shape index: {}]
  %s5 = sld [smem:[#allocation0]]
  $region57: #{tpu_custom_call.1} parent=0
    _
  %s7 = ssub.s32 1, %s5
  %s8 = scalar_select 0, %s7, %s5
  $region1: #{tpu_custom_call.1} parent=0
    #allocation5 [shape = 'u8[8192]{0}', space=vmem, size = 0x2000, scoped, tag = 'input window, operand 0']
    #allocation6 [shape = 's32[2]{0}', space=sflag, size = 0x8, scoped, tag = 'scoped memory for tpu_custom_call.1']
    #allocation7 [shape = 's32[2]{0}', space=sflag, size = 0x8, scoped, tag = 'scoped memory for tpu_custom_call.1']
    #allocation8 [shape = 'u8[12288]{0}', space=vmem, size = 0x3000, scoped, tag = 'output window, operand 0']
    %9 = vsyncpa [#allocation6], 0
    %s10 = scalar_lea.sflag [#allocation6], 1
    %11 = vsyncpa %s10, 0
    %12 = vsyncpa [#allocation7], 0
    %s13 = scalar_lea.sflag [#allocation7], 1
    %14 = vsyncpa %s13, 0
    loop: start=0, step=1, limit=4
    $region2: #{tpu_custom_call.1} parent=1 // loop_pre_header
      _
    $region3: #{tpu_custom_call.1} parent=1 // loop_header
      %s16 = sphi 0, %s20
      %p17 = scmp.ge.s32.totalorder %s16, 4
      %s23 = sphi 0, %s42
      %s24 = sphi 0, %s38
      %s25 = sphi 0, %s34
      %s26 = sphi 0, %s23
      %s27 = sphi 0, %s24
      %s28 = sphi 0, %s25
      %s29 = sphi 0, %s26
      %s30 = sphi 0, %s27
      %s31 = sphi 0, %s28
      %s47 = sphi 0, %s49
      %s50 = sphi 0, %s47
      %s51 = sphi 0, %s50
      %s67 = sphi 0, %s51
      %s75 = sphi 0, %s77
      %s78 = sphi 0, %s75
      %s79 = sphi 0, %s78
      %s95 = sphi 0, %s79
      %s101 = sphi 0, %s103
      %s104 = sphi 0, %s101
      %s105 = sphi 0, %s104
      %s121 = sphi 0, %s105
      %s131 = sphi 0, %s133
      %s134 = sphi 0, %s131
      %s135 = sphi 0, %s134
      %s151 = sphi 0, %s135
    $region4: #{tpu_custom_call.1} parent=1 // loop_header_branch
      %19 = sbr.rel (%p17) target = $region8
    $region5: #{tpu_custom_call.1} parent=1 // loop_body
      %s21 = ssub.s32 %s16, 1
      %s22 = ssub.s32 %s16, 2
      %s32 = sadd.s32 1, %s25
      %p33 = scmp.ge.s32.totalorder %s32, 1
      %s34 = scalar_select %p33, 0, %s32
      %s35 = sadd.s32 1, %s24
      %s36 = scalar_select %p33, %s35, %s24
      %p37 = scmp.ge.s32.totalorder %s36, 1
      %s38 = scalar_select %p37, 0, %s36
      %s39 = sadd.s32 1, %s23
      %s40 = scalar_select %p37, %s39, %s23
      %p41 = scmp.ge.s32.totalorder %s40, 2
      %s42 = scalar_select %p41, 0, %s40
      %s43 = ssub.s32 %s23, %s42
      %s44 = ssub.s32 %s25, %s34
      %s45 = sor.u32 %s43, %s44
      %p46 = scmp.eq.s32.totalorder %s45, 0
      %s48 = sadd.s32 %s47, 1
      %s49 = scalar_select %p46, %s47, %s48
      %p52 = pneg %p46
      %p53 = scmp.eq.s32.totalorder %s16, 1
      %p54 = por %p52, %p53
      %p55 = scmp.ne.s32.totalorder %s47, %s50
      %p56 = scmp.eq.s32.totalorder %s16, 0
      %p57 = por %p55, %p56
      %p58 = scmp.ne.s32.totalorder %s47, %s50
      %p59 = scmp.eq.s32.totalorder %s21, 1
      %p60 = por %p58, %p59
      %p61 = scmp.ne.s32.totalorder %s50, %s51
      %p62 = scmp.eq.s32.totalorder %s21, 0
      %p63 = por %p61, %p62
      %p64 = scmp.ne.s32.totalorder %s50, %s51
      %p65 = scmp.eq.s32.totalorder %s22, 1
      %p66 = por %p64, %p65
      %p68 = scmp.ne.s32.totalorder %s51, %s67
      %p69 = scmp.eq.s32.totalorder %s22, 0
      %p70 = por %p68, %p69
      %s71 = ssub.s32 %s23, %s42
      %s72 = ssub.s32 %s24, %s38
      %s73 = sor.u32 %s71, %s72
      %p74 = scmp.eq.s32.totalorder %s73, 0
      %s76 = sadd.s32 %s75, 1
      %s77 = scalar_select %p74, %s75, %s76
      %p80 = pneg %p74
      %p81 = scmp.eq.s32.totalorder %s16, 1
      %p82 = por %p80, %p81
      %p83 = scmp.ne.s32.totalorder %s75, %s78
      %p84 = scmp.eq.s32.totalorder %s16, 0
      %p85 = por %p83, %p84
      %p86 = scmp.ne.s32.totalorder %s75, %s78
      %p87 = scmp.eq.s32.totalorder %s21, 1
      %p88 = por %p86, %p87
      %p89 = scmp.ne.s32.totalorder %s78, %s79
      %p90 = scmp.eq.s32.totalorder %s21, 0
      %p91 = por %p89, %p90
      %p92 = scmp.ne.s32.totalorder %s78, %s79
      %p93 = scmp.eq.s32.totalorder %s22, 1
      %p94 = por %p92, %p93
      %p96 = scmp.ne.s32.totalorder %s79, %s95
      %p97 = scmp.eq.s32.totalorder %s22, 0
      %p98 = por %p96, %p97
      %s99 = ssub.s32 %s25, %s34
      %p100 = scmp.eq.s32.totalorder %s99, 0
      %s102 = sadd.s32 %s101, 1
      %s103 = scalar_select %p100, %s101, %s102
      %p106 = pneg %p100
      %p107 = scmp.eq.s32.totalorder %s16, 1
      %p108 = por %p106, %p107
      %p109 = scmp.ne.s32.totalorder %s101, %s104
      %p110 = scmp.eq.s32.totalorder %s16, 0
      %p111 = por %p109, %p110
      %p112 = scmp.ne.s32.totalorder %s101, %s104
      %p113 = scmp.eq.s32.totalorder %s21, 1
      %p114 = por %p112, %p113
      %p115 = scmp.ne.s32.totalorder %s104, %s105
      %p116 = scmp.eq.s32.totalorder %s21, 0
      %p117 = por %p115, %p116
      %p118 = scmp.ne.s32.totalorder %s104, %s105
      %p119 = scmp.eq.s32.totalorder %s22, 1
      %p120 = por %p118, %p119
      %p122 = scmp.ne.s32.totalorder %s105, %s121
      %p123 = scmp.eq.s32.totalorder %s22, 0
      %p124 = por %p122, %p123
      %s125 = ssub.s32 %s23, %s42
      %s126 = ssub.s32 %s25, %s34
      %s127 = sor.u32 %s125, %s126
      %s128 = ssub.s32 %s24, %s38
      %s129 = sor.u32 %s127, %s128
      %p130 = scmp.eq.s32.totalorder %s129, 0
      %s132 = sadd.s32 %s131, 1
      %s133 = scalar_select %p130, %s131, %s132
      %p136 = pneg %p130
      %p137 = scmp.eq.s32.totalorder %s16, 1
      %p138 = por %p136, %p137
      %p139 = scmp.ne.s32.totalorder %s131, %s134
      %p140 = scmp.eq.s32.totalorder %s16, 0
      %p141 = por %p139, %p140
      %p142 = scmp.ne.s32.totalorder %s131, %s134
      %p143 = scmp.eq.s32.totalorder %s21, 1
      %p144 = por %p142, %p143
      %p145 = scmp.ne.s32.totalorder %s134, %s135
      %p146 = scmp.eq.s32.totalorder %s21, 0
      %p147 = por %p145, %p146
      %p148 = scmp.ne.s32.totalorder %s134, %s135
      %p149 = scmp.eq.s32.totalorder %s22, 1
      %p150 = por %p148, %p149
      %p152 = scmp.ne.s32.totalorder %s135, %s151
      %p153 = scmp.eq.s32.totalorder %s22, 0
      %p154 = por %p152, %p153
      %p155 = scmp.le.s32.totalorder 1, %s16
      %p156 = scmp.lt.s32.totalorder %s16, 3
      %p157 = pnand %p155, %p156
      %p158 = pneg %p157
      // Predicated region
      $region9: #{tpu_custom_call.1} parent=5 // pred_check
        _
      $region10: #{tpu_custom_call.1} parent=5 // pred_check_branch
        %160 = sbr.rel (%p157) target = $region12
      $region11: #{tpu_custom_call.1} parent=5 // pred_region
        %s161 = ssub.s32 %s16, 1
        // Predicated region
        $region13: #{tpu_custom_call.1} parent=11 // pred_check
          %p162 = pneg %p117
        $region14: #{tpu_custom_call.1} parent=11 // pred_check_branch
          %164 = sbr.rel (%p162) target = $region16
        $region15: #{tpu_custom_call.1} parent=11 // pred_region
          %p165 = scmp.lt.s32.totalorder %s28, 0
          %s166 = scalar_select %p165, %s28, 0
          %s167 = smul.addr %s166, 8
          %s168 = scalar_lea.vmem %s3, %s167
        $region16: #{tpu_custom_call.1} parent=11 // pred_fallthru
          _
      $region12: #{tpu_custom_call.1} parent=5 // pred_fallthru
        _
      %p169 = scmp.lt.s32.totalorder %s16, 2
      // Predicated region
      $region17: #{tpu_custom_call.1} parent=5 // pred_check
        %p170 = pneg %p169
      $region18: #{tpu_custom_call.1} parent=5 // pred_check_branch
        %172 = sbr.rel (%p170) target = $region20
      $region19: #{tpu_custom_call.1} parent=5 // pred_region
        // Predicated region
        $region21: #{tpu_custom_call.1} parent=19 // pred_check
          %p173 = pneg %p57
        $region22: #{tpu_custom_call.1} parent=19 // pred_check_branch
          %175 = sbr.rel (%p173) target = $region24
        $region23: #{tpu_custom_call.1} parent=19 // pred_region
          %s176 = sand.u32 %s47, 1
          %s177 = scalar_lea.sflag [#allocation6], %s176
          %s178 = sand.u32 %s47, 1
          %s179 = smul.addr %s178, 8
          %s180 = scalar_lea.vmem [#allocation5], %s179
          %182 = vsyncadd %s177, 0
          %s183 = smul.addr %s25, 2
          %s184 = smul.addr %s23, 2
          %s185 = sadd.s32 %s183, %s184
          %s186 = smul.addr %s185, 4
          %s187 = scalar_lea.hbm %s0, %s186
          %s189 = sshll.u32 %s187, 4
          %s190 = int_to_ptr.hbm [resolvable:$true] %s189
          %s191 = sshll.u32 %s180, 4
          %s192 = int_to_ptr.vmem [resolvable:$true] %s191
          %194 = dma.hbm_to_vmem [thread:$0]  %s190, 128, %s192, %s177
        $region24: #{tpu_custom_call.1} parent=19 // pred_fallthru
          _
        // Predicated region
        $region25: #{tpu_custom_call.1} parent=19 // pred_check
          %p195 = pneg %p85
        $region26: #{tpu_custom_call.1} parent=19 // pred_check_branch
          %197 = sbr.rel (%p195) target = $region28
        $region27: #{tpu_custom_call.1} parent=19 // pred_region
          %s198 = smul.u32 3, %s24
          %p199 = scmp.lt.s32.totalorder %s23, 1
          %s200 = scalar_select %p199, %s23, 1
          %p201 = scmp.lt.s32.totalorder %s198, 2
          %s202 = scalar_select %p201, %s198, 2
          %s203 = smul.addr %s200, 3
          %s204 = sadd.s32 %s202, %s203
          %s205 = scalar_lea.vmem %s2, %s204
          %s206 = smul.u32 3, %s24
        $region28: #{tpu_custom_call.1} parent=19 // pred_fallthru
          _
      $region20: #{tpu_custom_call.1} parent=5 // pred_fallthru
        _
      %p207 = scmp.le.s32.totalorder 1, %s16
      %p208 = scmp.lt.s32.totalorder %s16, 3
      %p209 = pnand %p207, %p208
      %p210 = pneg %p209
      // Predicated region
      $region29: #{tpu_custom_call.1} parent=5 // pred_check
        _
      $region30: #{tpu_custom_call.1} parent=5 // pred_check_branch
        %212 = sbr.rel (%p209) target = $region32
      $region31: #{tpu_custom_call.1} parent=5 // pred_region
        %s213 = ssub.s32 %s16, 1
        %s214 = sand.u32 %s50, 1
        %s215 = scalar_lea.sflag [#allocation6], %s214
        %s216 = sand.u32 %s50, 1
        %s217 = smul.addr %s216, 8
        %s218 = scalar_lea.vmem [#allocation5], %s217
        // Predicated region
        $region33: #{tpu_custom_call.1} parent=31 // pred_check
          %p219 = pneg %p63
        $region34: #{tpu_custom_call.1} parent=31 // pred_check_branch
          %221 = sbr.rel (%p219) target = $region36
        $region35: #{tpu_custom_call.1} parent=31 // pred_region
          %223 = dma.done %s215, 128
        $region36: #{tpu_custom_call.1} parent=31 // pred_fallthru
          _
        %s224 = sand.u32 %s50, 1
        %s225 = scalar_lea.sflag [#allocation6], %s224
        %s226 = sand.u32 %s50, 1
        %s227 = smul.addr %s226, 8
        %s228 = scalar_lea.vmem [#allocation5], %s227
        %p229 = pneg %p63
        %p230 = pneg %p60
        %s231 = smul.u32 3, %s27
        %p232 = scmp.lt.s32.totalorder %s26, 1
        %s233 = scalar_select %p232, %s26, 1
        %p234 = scmp.lt.s32.totalorder %s231, 2
        %s235 = scalar_select %p234, %s231, 2
        %s236 = smul.addr %s233, 3
        %s237 = sadd.s32 %s235, %s236
        %s238 = scalar_lea.vmem %s2, %s237
        %p239 = pneg %p91
        %p240 = pneg %p88
        %p241 = scmp.lt.s32.totalorder %s28, 0
        %s242 = scalar_select %p241, %s28, 0
        %s243 = smul.addr %s242, 8
        %s244 = scalar_lea.vmem %s3, %s243
        %p245 = pneg %p117
        %p246 = pneg %p114
        %p247 = pneg %p147
        %p248 = pneg %p144
        %s249 = sand.u32 %s134, 1
        %s250 = scalar_lea.sflag [#allocation7], %s249
        %s251 = sand.u32 %s134, 1
        %s252 = smul.addr %s251, 12
        %s253 = scalar_lea.vmem [#allocation8], %s252
        %s254 = smul.u32 3, %s27
        %p255 = scmp.lt.s32.totalorder %s26, 1
        %s256 = scalar_select %p255, %s26, 1
        %p257 = scmp.lt.s32.totalorder %s254, 2
        %s258 = scalar_select %p257, %s254, 2
        %s259 = smul.addr %s256, 3
        %s260 = sadd.s32 %s258, %s259
        %s261 = scalar_lea.vmem %s2, %s260
        %s262 = smul.u32 3, %s27
        %p263 = scmp.lt.s32.totalorder %s28, 0
        %s264 = scalar_select %p263, %s28, 0
        %s265 = smul.addr %s264, 8
        %s266 = scalar_lea.vmem %s3, %s265
        %s267 = smul.u32 3, %s27
        %p269 = scmp.eq.s32.totalorder %s28, 0
        // Predicated region
        $region37: #{tpu_custom_call.1} parent=31 // pred_check
          %p270 = pneg %p269
        $region38: #{tpu_custom_call.1} parent=31 // pred_check_branch
          %272 = sbr.rel (%p270) target = $region40
        $region39: #{tpu_custom_call.1} parent=31 // pred_region
          %s273 = smul.u32 %s27, 384
          %s274 = sshra.s32 %s273, 7
          %s275 = sand.u32 %s273, 127
          %s276 = smul.u32 %s26, 8
          %s277 = sadd.s32 %s274, %s276
          %s278 = smul.addr %s277, 4
          %s279 = scalar_lea.hbm %s1, %s278
          // Predicated region
          $region41: #{tpu_custom_call.1} parent=39 // pred_check
            _
          $region42: #{tpu_custom_call.1} parent=39 // pred_check_branch
            %281 = sbr.rel target = $region44
          $region43: #{tpu_custom_call.1} parent=39 // pred_region
            %282 = sst [smem:[#allocation11]] [#allocation10]
            %283 = sst [smem:[#allocation12]] [#allocation9]
          $region44: #{tpu_custom_call.1} parent=39 // pred_fallthru
            _
          %285 = shalt.err (0)
          %s287 = sshll.u32 %s279, 4
          %s288 = int_to_ptr.hbm [resolvable:$true] %s287
          %s289 = sshll.u32 [#allocation2], 4
          %s290 = int_to_ptr.vmem [resolvable:$true] %s289
          %292 = dma.hbm_to_vmem [thread:$0]  %s288, 512, %s290, [#allocation4]
          %s293 = smul.u32 4, 2
          %s294 = smul.u32 %s293, 4
          %s295 = sshll.u32 %s294, 4
          %296 = dma.done [#allocation4], %s295
          %v297 = vld [vmem:[#allocation2] sm:$0xff]
          %v298 = vld [vmem:[#allocation2 + $0x8] sm:$0xff]
          %v299 = vld [vmem:[#allocation2 + $0x10] sm:$0xff]
          %v300 = vld [vmem:[#allocation2 + $0x18] sm:$0xff]
          %305 = vrot.lane.b32.xlu0 %v297, 83
          %v306 = vpop.permute.xlu0 %305
          %307 = vrot.lane.b32.xlu0 %v298, 83
          %v308 = vpop.permute.xlu0 %307
          %309 = vrot.lane.b32.xlu0 %v299, 83
          %v310 = vpop.permute.xlu0 %309
          %311 = vrot.lane.b32.xlu0 %v300, 83
          %v312 = vpop.permute.xlu0 %311
          %v313 = vrot.slane %v306, 4
          %v314 = vrot.slane %v308, 4
          %v315 = vrot.slane %v310, 4
          %v316 = vrot.slane %v312, 4
          %vm317 = vcmask 1043456
          %v318 = vsel %vm317, %v313, %v314
          %vm319 = vcmask 678912
          %v320 = vsel %vm319, %v306, %v318
          %v321 = vsel %vm319, %v308, %v314
          %v322 = vsel %vm317, %v315, %v316
          %v323 = vsel %vm319, %v310, %v322
          %v324 = vsel %vm319, %v312, %v316
          %329 = vst [vmem:[#allocation3] sm:$0xff] %v320
          %330 = vst [vmem:[#allocation3 + $0x8] sm:$0xf] %v321
          %331 = vst [vmem:[#allocation3 + $0xc] sm:$0xff] %v323
          %332 = vst [vmem:[#allocation3 + $0x14] sm:$0xf] %v324
          %v333 = vld [vmem:[#allocation2] sm:$0xff]
          %v334 = vld [vmem:[#allocation2 + $0x8] sm:$0xff]
          %v335 = vld [vmem:[#allocation2 + $0x10] sm:$0xff]
          %v336 = vld [vmem:[#allocation2 + $0x18] sm:$0xff]
          %341 = vrot.lane.b32.xlu0 %v333, 82
          %v342 = vpop.permute.xlu0 %341
          %343 = vrot.lane.b32.xlu0 %v334, 82
          %v344 = vpop.permute.xlu0 %343
          %345 = vrot.lane.b32.xlu0 %v335, 82
          %v346 = vpop.permute.xlu0 %345
          %347 = vrot.lane.b32.xlu0 %v336, 82
          %v348 = vpop.permute.xlu0 %347
          %v349 = vrot.slane %v342, 4
          %v350 = vrot.slane %v344, 4
          %v351 = vrot.slane %v346, 4
          %v352 = vrot.slane %v348, 4
          %v353 = vsel %vm317, %v349, %v350
          %vm354 = vcmask 670720
          %v355 = vsel %vm354, %v342, %v353
          %v356 = vsel %vm354, %v344, %v350
          %v357 = vsel %vm317, %v351, %v352
          %v358 = vsel %vm354, %v346, %v357
          %v359 = vsel %vm354, %v348, %v352
          %364 = vst [vmem:[#allocation3 + $0x18] sm:$0xff] %v355
          %365 = vst [vmem:[#allocation3 + $0x20] sm:$0xf] %v356
          %366 = vst [vmem:[#allocation3 + $0x24] sm:$0xff] %v358
          %367 = vst [vmem:[#allocation3 + $0x2c] sm:$0xf] %v359
          %v368 = vld [vmem:[#allocation2] sm:$0xff]
          %v369 = vld [vmem:[#allocation2 + $0x8] sm:$0xff]
          %v370 = vld [vmem:[#allocation2 + $0x10] sm:$0xff]
          %v371 = vld [vmem:[#allocation2 + $0x18] sm:$0xff]
          %376 = vrot.lane.b32.xlu0 %v368, 81
          %v377 = vpop.permute.xlu0 %376
          %378 = vrot.lane.b32.xlu0 %v369, 81
          %v379 = vpop.permute.xlu0 %378
          %380 = vrot.lane.b32.xlu0 %v370, 81
          %v381 = vpop.permute.xlu0 %380
          %382 = vrot.lane.b32.xlu0 %v371, 81
          %v383 = vpop.permute.xlu0 %382
          %v384 = vrot.slane %v377, 4
          %v385 = vrot.slane %v379, 4
          %v386 = vrot.slane %v381, 4
          %v387 = vrot.slane %v383, 4
          %v388 = vsel %vm317, %v384, %v385
          %vm389 = vcmask 662528
          %v390 = vsel %vm389, %v377, %v388
          %v391 = vsel %vm389, %v379, %v385
          %v392 = vsel %vm317, %v386, %v387
          %v393 = vsel %vm389, %v381, %v392
          %v394 = vsel %vm389, %v383, %v387
          %399 = vst [vmem:[#allocation3 + $0x30] sm:$0xff] %v390
          %400 = vst [vmem:[#allocation3 + $0x38] sm:$0xf] %v391
          %401 = vst [vmem:[#allocation3 + $0x3c] sm:$0xff] %v393
          %402 = vst [vmem:[#allocation3 + $0x44] sm:$0xf] %v394
          %v403 = vld [vmem:[#allocation2] sm:$0xff]
          %v404 = vld [vmem:[#allocation2 + $0x8] sm:$0xff]
          %v405 = vld [vmem:[#allocation2 + $0x10] sm:$0xff]
          %v406 = vld [vmem:[#allocation2 + $0x18] sm:$0xff]
          %411 = vrot.lane.b32.xlu0 %v403, 65
          %v412 = vpop.permute.xlu0 %411
          %413 = vrot.lane.b32.xlu0 %v404, 65
          %v414 = vpop.permute.xlu0 %413
          %415 = vrot.lane.b32.xlu0 %v405, 65
          %v416 = vpop.permute.xlu0 %415
          %417 = vrot.lane.b32.xlu0 %v406, 65
          %v418 = vpop.permute.xlu0 %417
          %v419 = vrot.slane %v412, 4
          %v420 = vrot.slane %v414, 4
          %v421 = vrot.slane %v416, 4
          %v422 = vrot.slane %v418, 4
          %v423 = vsel %vm317, %v419, %v420
          %vm424 = vcmask 531456
          %v425 = vsel %vm424, %v412, %v423
          %v426 = vsel %vm424, %v414, %v420
          %v427 = vsel %vm317, %v421, %v422
          %v428 = vsel %vm424, %v416, %v427
          %v429 = vsel %vm424, %v418, %v422
          %434 = vst [vmem:[#allocation3 + $0x48] sm:$0xff] %v425
          %435 = vst [vmem:[#allocation3 + $0x50] sm:$0xf] %v426
          %436 = vst [vmem:[#allocation3 + $0x54] sm:$0xff] %v428
          %437 = vst [vmem:[#allocation3 + $0x5c] sm:$0xf] %v429
          %v438 = vld [vmem:[#allocation2] sm:$0xff]
          %v439 = vld [vmem:[#allocation2 + $0x8] sm:$0xff]
          %v440 = vld [vmem:[#allocation2 + $0x10] sm:$0xff]
          %v441 = vld [vmem:[#allocation2 + $0x18] sm:$0xff]
          %446 = vrot.lane.b32.xlu0 %v438, 64
          %v447 = vpop.permute.xlu0 %446
          %448 = vrot.lane.b32.xlu0 %v439, 64
          %v449 = vpop.permute.xlu0 %448
          %450 = vrot.lane.b32.xlu0 %v440, 64
          %v451 = vpop.permute.xlu0 %450
          %452 = vrot.lane.b32.xlu0 %v441, 64
          %v453 = vpop.permute.xlu0 %452
          %v454 = vrot.slane %v447, 4
          %v455 = vrot.slane %v449, 4
          %v456 = vrot.slane %v451, 4
          %v457 = vrot.slane %v453, 4
          %v458 = vsel %vm317, %v454, %v455
          %vm459 = vcmask 523264
          %v460 = vsel %vm459, %v447, %v458
          %v461 = vsel %vm459, %v449, %v455
          %v462 = vsel %vm317, %v456, %v457
          %v463 = vsel %vm459, %v451, %v462
          %v464 = vsel %vm459, %v453, %v457
          %469 = vst [vmem:[#allocation3 + $0x60] sm:$0xff] %v460
          %470 = vst [vmem:[#allocation3 + $0x68] sm:$0xf] %v461
          %471 = vst [vmem:[#allocation3 + $0x6c] sm:$0xff] %v463
          %472 = vst [vmem:[#allocation3 + $0x74] sm:$0xf] %v464
          %v473 = vld [vmem:[#allocation2] sm:$0xff]
          %v474 = vld [vmem:[#allocation2 + $0x8] sm:$0xff]
          %v475 = vld [vmem:[#allocation2 + $0x10] sm:$0xff]
          %v476 = vld [vmem:[#allocation2 + $0x18] sm:$0xff]
          %481 = vrot.lane.b32.xlu0 %v473, 63
          %v482 = vpop.permute.xlu0 %481
          %483 = vrot.lane.b32.xlu0 %v474, 63
          %v484 = vpop.permute.xlu0 %483
          %485 = vrot.lane.b32.xlu0 %v475, 63
          %v486 = vpop.permute.xlu0 %485
          %487 = vrot.lane.b32.xlu0 %v476, 63
          %v488 = vpop.permute.xlu0 %487
          %v489 = vrot.slane %v482, 4
          %v490 = vrot.slane %v484, 4
          %v491 = vrot.slane %v486, 4
          %v492 = vrot.slane %v488, 4
          %v493 = vsel %vm317, %v489, %v490
          %vm494 = vcmask 515072
          %v495 = vsel %vm494, %v482, %v493
          %v496 = vsel %vm494, %v484, %v490
          %v497 = vsel %vm317, %v491, %v492
          %v498 = vsel %vm494, %v486, %v497
          %v499 = vsel %vm494, %v488, %v492
          %504 = vst [vmem:[#allocation3 + $0x78] sm:$0xff] %v495
          %505 = vst [vmem:[#allocation3 + $0x80] sm:$0xf] %v496
          %506 = vst [vmem:[#allocation3 + $0x84] sm:$0xff] %v498
          %507 = vst [vmem:[#allocation3 + $0x8c] sm:$0xf] %v499
          %v508 = vld [vmem:[#allocation2] sm:$0xff]
          %v509 = vld [vmem:[#allocation2 + $0x8] sm:$0xff]
          %v510 = vld [vmem:[#allocation2 + $0x10] sm:$0xff]
          %v511 = vld [vmem:[#allocation2 + $0x18] sm:$0xff]
          %516 = vrot.lane.b32.xlu0 %v508, 47
          %v517 = vpop.permute.xlu0 %516
          %518 = vrot.lane.b32.xlu0 %v509, 47
          %v519 = vpop.permute.xlu0 %518
          %520 = vrot.lane.b32.xlu0 %v510, 47
          %v521 = vpop.permute.xlu0 %520
          %522 = vrot.lane.b32.xlu0 %v511, 47
          %v523 = vpop.permute.xlu0 %522
          %v524 = vrot.slane %v517, 4
          %v525 = vrot.slane %v519, 4
          %v526 = vrot.slane %v521, 4
          %v527 = vrot.slane %v523, 4
          %v528 = vsel %vm317, %v524, %v525
          %vm529 = vcmask 384000
          %v530 = vsel %vm529, %v517, %v528
          %v531 = vsel %vm529, %v519, %v525
          %v532 = vsel %vm317, %v526, %v527
          %v533 = vsel %vm529, %v521, %v532
          %v534 = vsel %vm529, %v523, %v527
          %539 = vst [vmem:[#allocation3 + $0x90] sm:$0xff] %v530
          %540 = vst [vmem:[#allocation3 + $0x98] sm:$0xf] %v531
          %541 = vst [vmem:[#allocation3 + $0x9c] sm:$0xff] %v533
          %542 = vst [vmem:[#allocation3 + $0xa4] sm:$0xf] %v534
          %v543 = vld [vmem:[#allocation2] sm:$0xff]
          %v544 = vld [vmem:[#allocation2 + $0x8] sm:$0xff]
          %v545 = vld [vmem:[#allocation2 + $0x10] sm:$0xff]
          %v546 = vld [vmem:[#allocation2 + $0x18] sm:$0xff]
          %551 = vrot.lane.b32.xlu0 %v543, 46
          %v552 = vpop.permute.xlu0 %551
          %553 = vrot.lane.b32.xlu0 %v544, 46
          %v554 = vpop.permute.xlu0 %553
          %555 = vrot.lane.b32.xlu0 %v545, 46
          %v556 = vpop.permute.xlu0 %555
          %557 = vrot.lane.b32.xlu0 %v546, 46
          %v558 = vpop.permute.xlu0 %557
          %v559 = vrot.slane %v552, 4
          %v560 = vrot.slane %v554, 4
          %v561 = vrot.slane %v556, 4
          %v562 = vrot.slane %v558, 4
          %v563 = vsel %vm317, %v559, %v560
          %vm564 = vcmask 375808
          %v565 = vsel %vm564, %v552, %v563
          %v566 = vsel %vm564, %v554, %v560
          %v567 = vsel %vm317, %v561, %v562
          %v568 = vsel %vm564, %v556, %v567
          %v569 = vsel %vm564, %v558, %v562
          %574 = vst [vmem:[#allocation3 + $0xa8] sm:$0xff] %v565
          %575 = vst [vmem:[#allocation3 + $0xb0] sm:$0xf] %v566
          %576 = vst [vmem:[#allocation3 + $0xb4] sm:$0xff] %v568
          %577 = vst [vmem:[#allocation3 + $0xbc] sm:$0xf] %v569
          %v578 = vld [vmem:[#allocation2] sm:$0xff]
          %v579 = vld [vmem:[#allocation2 + $0x8] sm:$0xff]
          %v580 = vld [vmem:[#allocation2 + $0x10] sm:$0xff]
          %v581 = vld [vmem:[#allocation2 + $0x18] sm:$0xff]
          %586 = vrot.lane.b32.xlu0 %v578, 45
          %v587 = vpop.permute.xlu0 %586
          %588 = vrot.lane.b32.xlu0 %v579, 45
          %v589 = vpop.permute.xlu0 %588
          %590 = vrot.lane.b32.xlu0 %v580, 45
          %v591 = vpop.permute.xlu0 %590
          %592 = vrot.lane.b32.xlu0 %v581, 45
          %v593 = vpop.permute.xlu0 %592
          %v594 = vrot.slane %v587, 4
          %v595 = vrot.slane %v589, 4
          %v596 = vrot.slane %v591, 4
          %v597 = vrot.slane %v593, 4
          %v598 = vsel %vm317, %v594, %v595
          %vm599 = vcmask 367616
          %v600 = vsel %vm599, %v587, %v598
          %v601 = vsel %vm599, %v589, %v595
          %v602 = vsel %vm317, %v596, %v597
          %v603 = vsel %vm599, %v591, %v602
          %v604 = vsel %vm599, %v593, %v597
          %609 = vst [vmem:[#allocation3 + $0xc0] sm:$0xff] %v600
          %610 = vst [vmem:[#allocation3 + $0xc8] sm:$0xf] %v601
          %611 = vst [vmem:[#allocation3 + $0xcc] sm:$0xff] %v603
          %612 = vst [vmem:[#allocation3 + $0xd4] sm:$0xf] %v604
        $region40: #{tpu_custom_call.1} parent=31 // pred_fallthru
          _
        %v613 = vld [vmem:[%s218] sm:$0xff]
        %v614 = vld [vmem:[#allocation3] sm:$0xff]
        %v615 = vld [vmem:[#allocation3 + $0x8] sm:$0xf]
        %v616 = vld [vmem:[#allocation3 + $0xc] sm:$0xff]
        %v617 = vld [vmem:[#allocation3 + $0x14] sm:$0xf]
        %v618 = vld [vmem:[#allocation3 + $0x18] sm:$0xff]
        %v619 = vld [vmem:[#allocation3 + $0x20] sm:$0xf]
        %v620 = vld [vmem:[#allocation3 + $0x24] sm:$0xff]
        %v621 = vld [vmem:[#allocation3 + $0x2c] sm:$0xf]
        %v622 = vld [vmem:[#allocation3 + $0x30] sm:$0xff]
        %v623 = vld [vmem:[#allocation3 + $0x38] sm:$0xf]
        %v624 = vld [vmem:[#allocation3 + $0x3c] sm:$0xff]
        %v625 = vld [vmem:[#allocation3 + $0x44] sm:$0xf]
        %v626 = vld [vmem:[#allocation3 + $0x48] sm:$0xff]
        %v627 = vld [vmem:[#allocation3 + $0x50] sm:$0xf]
        %v628 = vld [vmem:[#allocation3 + $0x54] sm:$0xff]
        %v629 = vld [vmem:[#allocation3 + $0x5c] sm:$0xf]
        %v630 = vld [vmem:[#allocation3 + $0x60] sm:$0xff]
        %v631 = vld [vmem:[#allocation3 + $0x68] sm:$0xf]
        %v632 = vld [vmem:[#allocation3 + $0x6c] sm:$0xff]
        %v633 = vld [vmem:[#allocation3 + $0x74] sm:$0xf]
        %v634 = vld [vmem:[#allocation3 + $0x78] sm:$0xff]
        %v635 = vld [vmem:[#allocation3 + $0x80] sm:$0xf]
        %v636 = vld [vmem:[#allocation3 + $0x84] sm:$0xff]
        %v637 = vld [vmem:[#allocation3 + $0x8c] sm:$0xf]
        %v638 = vld [vmem:[#allocation3 + $0x90] sm:$0xff]
        %v639 = vld [vmem:[#allocation3 + $0x98] sm:$0xf]
        %v640 = vld [vmem:[#allocation3 + $0x9c] sm:$0xff]
        %v641 = vld [vmem:[#allocation3 + $0xa4] sm:$0xf]
        %v642 = vld [vmem:[#allocation3 + $0xa8] sm:$0xff]
        %v643 = vld [vmem:[#allocation3 + $0xb0] sm:$0xf]
        %v644 = vld [vmem:[#allocation3 + $0xb4] sm:$0xff]
        %v645 = vld [vmem:[#allocation3 + $0xbc] sm:$0xf]
        %v646 = vld [vmem:[#allocation3 + $0xc0] sm:$0xff]
        %v647 = vld [vmem:[#allocation3 + $0xc8] sm:$0xf]
        %v648 = vld [vmem:[#allocation3 + $0xcc] sm:$0xff]
        %v649 = vld [vmem:[#allocation3 + $0xd4] sm:$0xf]
        %v650 = vld [vmem:[%s261] sm:$0x7]
        %v652 = vperm.slane %v650, 0
        %v653 = vperm.slane %v650, 1
        %v654 = vperm.slane %v650, 2
        %v659 = vunpack.c.l.b16 %v613
        %v660 = vunpack.c.h.b16 %v613
        %v661 = vpack.c.b16 %v659, %v659
        %v662 = vpack.c.b16 %v660, %v660
        %v700 = vunpack.c.l.b16 %v614
        %v701 = vunpack.c.h.b16 %v614
        %v702 = vunpack.c.l.b16 %v615
        %v703 = vunpack.c.l.b16 %v616
        %v704 = vunpack.c.h.b16 %v616
        %v705 = vunpack.c.l.b16 %v617
        %v706 = vunpack.c.l.b16 %v618
        %v707 = vunpack.c.h.b16 %v618
        %v708 = vunpack.c.l.b16 %v619
        %v709 = vunpack.c.l.b16 %v620
        %v710 = vunpack.c.h.b16 %v620
        %v711 = vunpack.c.l.b16 %v621
        %v712 = vunpack.c.l.b16 %v622
        %v713 = vunpack.c.h.b16 %v622
        %v714 = vunpack.c.l.b16 %v623
        %v715 = vunpack.c.l.b16 %v624
        %v716 = vunpack.c.h.b16 %v624
        %v717 = vunpack.c.l.b16 %v625
        %v718 = vunpack.c.l.b16 %v626
        %v719 = vunpack.c.h.b16 %v626
        %v720 = vunpack.c.l.b16 %v627
        %v721 = vunpack.c.l.b16 %v628
        %v722 = vunpack.c.h.b16 %v628
        %v723 = vunpack.c.l.b16 %v629
        %v724 = vunpack.c.l.b16 %v630
        %v725 = vunpack.c.h.b16 %v630
        %v726 = vunpack.c.l.b16 %v631
        %v727 = vunpack.c.l.b16 %v632
        %v728 = vunpack.c.h.b16 %v632
        %v729 = vunpack.c.l.b16 %v633
        %v730 = vunpack.c.l.b16 %v634
        %v731 = vunpack.c.h.b16 %v634
        %v732 = vunpack.c.l.b16 %v635
        %v733 = vunpack.c.l.b16 %v636
        %v734 = vunpack.c.h.b16 %v636
        %v735 = vunpack.c.l.b16 %v637
        %v736 = vunpack.c.l.b16 %v638
        %v737 = vunpack.c.h.b16 %v638
        %v738 = vunpack.c.l.b16 %v639
        %v739 = vunpack.c.l.b16 %v640
        %v740 = vunpack.c.h.b16 %v640
        %v741 = vunpack.c.l.b16 %v641
        %v742 = vunpack.c.l.b16 %v642
        %v743 = vunpack.c.h.b16 %v642
        %v744 = vunpack.c.l.b16 %v643
        %v745 = vunpack.c.l.b16 %v644
        %v746 = vunpack.c.h.b16 %v644
        %v747 = vunpack.c.l.b16 %v645
        %v748 = vunpack.c.l.b16 %v646
        %v749 = vunpack.c.h.b16 %v646
        %v750 = vunpack.c.l.b16 %v647
        %v751 = vunpack.c.l.b16 %v648
        %v752 = vunpack.c.h.b16 %v648
        %v753 = vunpack.c.l.b16 %v649
        %v754 = vpack.c.b16 %v703, %v700
        %v755 = vpack.c.b16 %v704, %v701
        %v756 = vpack.c.b16 %v705, %v702
        %v757 = vpack.c.b16 %v709, %v706
        %v758 = vpack.c.b16 %v710, %v707
        %v759 = vpack.c.b16 %v711, %v708
        %v760 = vpack.c.b16 %v715, %v712
        %v761 = vpack.c.b16 %v716, %v713
        %v762 = vpack.c.b16 %v717, %v714
        %v763 = vpack.c.b16 %v721, %v718
        %v764 = vpack.c.b16 %v722, %v719
        %v765 = vpack.c.b16 %v723, %v720
        %v766 = vpack.c.b16 %v727, %v724
        %v767 = vpack.c.b16 %v728, %v725
        %v768 = vpack.c.b16 %v729, %v726
        %v769 = vpack.c.b16 %v733, %v730
        %v770 = vpack.c.b16 %v734, %v731
        %v771 = vpack.c.b16 %v735, %v732
        %v772 = vpack.c.b16 %v739, %v736
        %v773 = vpack.c.b16 %v740, %v737
        %v774 = vpack.c.b16 %v741, %v738
        %v775 = vpack.c.b16 %v745, %v742
        %v776 = vpack.c.b16 %v746, %v743
        %v777 = vpack.c.b16 %v747, %v744
        %v778 = vpack.c.b16 %v751, %v748
        %v779 = vpack.c.b16 %v752, %v749
        %v780 = vpack.c.b16 %v753, %v750
        %vm808 = vcmask 130048
        %v810 = vsel %vm808, %v662, 0
        %812 = vmatpush.bf16.msra.mxu0 %v775
        %813 = vmatpush.bf16.msra.mxu0 %v772
        %814 = vmatpush.bf16.msra.mxu0 %v769
        %815 = vmatpush.bf16.msra.mxu0 %v766
        %816 = vmatpush.bf16.msra.mxu0 %v763
        %817 = vmatpush.bf16.msra.mxu0 %v760
        %818 = vmatpush.bf16.msra.mxu0 %v757
        %819 = vmatpush.bf16.msra.mxu0 %v754
        %820 = vmatmul.bf16.gmra.mxu0 %v661
        %v821 = vpop.f32.mrf.mxu0
        %v822 = vadd.f32 %v652, %v821
        %v823 = vpop.f32.mrf.mxu0
        %824 = vdwg.mxu0
        %825 = vmatpush.bf16.msra.mxu0 0
        %826 = vmatpush.bf16.msra.mxu0 0
        %827 = vmatpush.bf16.msra.mxu0 0
        %828 = vmatpush.bf16.msra.mxu0 0
        %829 = vmatpush.bf16.msra.mxu0 0
        %830 = vmatpush.bf16.msra.mxu0 0
        %831 = vmatpush.bf16.msra.mxu0 0
        %832 = vmatpush.bf16.msra.mxu0 %v778
        %833 = vmatmul.bf16.gmra.mxu0 %v810
        %v834 = vpop.f32.mrf.mxu0
        %v835 = vadd.f32 %v822, %v834
        %v836 = vpop.f32.mrf.mxu0
        %837 = vdwg.mxu0
        %838 = vmatpush.bf16.msra.mxu0 %v776
        %839 = vmatpush.bf16.msra.mxu0 %v773
        %840 = vmatpush.bf16.msra.mxu0 %v770
        %841 = vmatpush.bf16.msra.mxu0 %v767
        %842 = vmatpush.bf16.msra.mxu0 %v764
        %843 = vmatpush.bf16.msra.mxu0 %v761
        %844 = vmatpush.bf16.msra.mxu0 %v758
        %845 = vmatpush.bf16.msra.mxu0 %v755
        %846 = vmatmul.bf16.gmra.mxu0 %v661
        %v847 = vpop.f32.mrf.mxu0
        %v848 = vadd.f32 %v653, %v847
        %v849 = vpop.f32.mrf.mxu0
        %850 = vdwg.mxu0
        %851 = vmatpush.bf16.msra.mxu0 0
        %852 = vmatpush.bf16.msra.mxu0 0
        %853 = vmatpush.bf16.msra.mxu0 0
        %854 = vmatpush.bf16.msra.mxu0 0
        %855 = vmatpush.bf16.msra.mxu0 0
        %856 = vmatpush.bf16.msra.mxu0 0
        %857 = vmatpush.bf16.msra.mxu0 0
        %858 = vmatpush.bf16.msra.mxu0 %v779
        %859 = vmatmul.bf16.gmra.mxu0 %v810
        %v860 = vpop.f32.mrf.mxu0
        %v861 = vadd.f32 %v848, %v860
        %v862 = vpop.f32.mrf.mxu0
        %863 = vdwg.mxu0
        %864 = vmatpush.bf16.msra.mxu0 %v777
        %865 = vmatpush.bf16.msra.mxu0 %v774
        %866 = vmatpush.bf16.msra.mxu0 %v771
        %867 = vmatpush.bf16.msra.mxu0 %v768
        %868 = vmatpush.bf16.msra.mxu0 %v765
        %869 = vmatpush.bf16.msra.mxu0 %v762
        %870 = vmatpush.bf16.msra.mxu0 %v759
        %871 = vmatpush.bf16.msra.mxu0 %v756
        %872 = vmatmul.bf16.gmra.mxu0 %v661
        %v873 = vpop.f32.mrf.mxu0
        %v874 = vadd.f32 %v654, %v873
        %v875 = vpop.f32.mrf.mxu0
        %876 = vdwg.mxu0
        %877 = vmatpush.bf16.msra.mxu0 0
        %878 = vmatpush.bf16.msra.mxu0 0
        %879 = vmatpush.bf16.msra.mxu0 0
        %880 = vmatpush.bf16.msra.mxu0 0
        %881 = vmatpush.bf16.msra.mxu0 0
        %882 = vmatpush.bf16.msra.mxu0 0
        %883 = vmatpush.bf16.msra.mxu0 0
        %884 = vmatpush.bf16.msra.mxu0 %v780
        %885 = vmatmul.bf16.gmra.mxu0 %v810
        %v886 = vpop.f32.mrf.mxu0
        %v887 = vadd.f32 %v874, %v886
        %v888 = vpop.f32.mrf.mxu0
        %889 = vdwg.mxu0
        %v890 = vld [vmem:[%s266] sm:$0xff]
        %892 = vset.pattern.permute.xlu0 0
        %893 = vperm.xlu0 %892, %v890
        %v894 = vpop.permute.xlu0 %893
        %v896 = vadd.f32 %v835, %v894
        %v897 = vadd.f32 %v861, %v894
        %v898 = vadd.f32 %v887, %v894
        %vm899 = vcmp.ge.f32.partialorder %v896, 0.0
        %vm900 = vcmp.ge.f32.partialorder %v897, 0.0
        %vm901 = vcmp.ge.f32.partialorder %v898, 0.0
        %v902 = vmul.f32 %v896, 0.2
        %v903 = vmul.f32 %v897, 0.2
        %v904 = vmul.f32 %v898, 0.2
        %v905 = vsel %vm899, %v896, %v902
        %v906 = vsel %vm900, %v897, %v903
        %v907 = vsel %vm901, %v898, %v904
        %v908 = vmul.f32 %v905, 1.4142135
        %v909 = vmul.f32 %v906, 1.4142135
        %v910 = vmul.f32 %v907, 1.4142135
        %v911 = vpack.c.bf16 %v909, %v908
        %v912 = vpack.c.bf16 %v910, %v910
        %913 = vst [vmem:[%s253] sm:$0xff] %v911
        %914 = vst [vmem:[%s253 + $0x8] sm:$0xf] %v912
        %s915 = sand.u32 %s134, 1
        %s916 = scalar_lea.sflag [#allocation7], %s915
        %s917 = sand.u32 %s134, 1
        %s918 = smul.addr %s917, 12
        %s919 = scalar_lea.vmem [#allocation8], %s918
        // Predicated region
        $region45: #{tpu_custom_call.1} parent=31 // pred_check
          %p920 = pneg %p144
        $region46: #{tpu_custom_call.1} parent=31 // pred_check_branch
          %922 = sbr.rel (%p920) target = $region48
        $region47: #{tpu_custom_call.1} parent=31 // pred_region
          %s923 = smul.u32 3, %s27
          %925 = vsyncadd %s916, 0
          %s926 = smul.addr %s28, 3
          %s927 = sadd.s32 %s923, %s926
          %s928 = smul.addr %s26, 3
          %s929 = sadd.s32 %s927, %s928
          %s930 = smul.addr %s929, 4
          %s931 = scalar_lea.hbm %s4, %s930
          %s933 = sshll.u32 %s919, 4
          %s934 = int_to_ptr.vmem [resolvable:$true] %s933
          %s935 = sshll.u32 %s931, 4
          %s936 = int_to_ptr.hbm [resolvable:$true] %s935
          %938 = dma.vmem_to_hbm [thread:$0]  %s934, 192, %s936, %s916
        $region48: #{tpu_custom_call.1} parent=31 // pred_fallthru
          _
      $region32: #{tpu_custom_call.1} parent=5 // pred_fallthru
        _
      %p939 = scmp.le.s32.totalorder 2, %s16
      // Predicated region
      $region49: #{tpu_custom_call.1} parent=5 // pred_check
        %p940 = pneg %p939
      $region50: #{tpu_custom_call.1} parent=5 // pred_check_branch
        %942 = sbr.rel (%p940) target = $region52
      $region51: #{tpu_custom_call.1} parent=5 // pred_region
        %s943 = ssub.s32 %s16, 2
        // Predicated region
        $region53: #{tpu_custom_call.1} parent=51 // pred_check
          %p944 = pneg %p150
        $region54: #{tpu_custom_call.1} parent=51 // pred_check_branch
          %946 = sbr.rel (%p944) target = $region56
        $region55: #{tpu_custom_call.1} parent=51 // pred_region
          %s947 = sand.u32 %s135, 1
          %s948 = scalar_lea.sflag [#allocation7], %s947
          %s949 = sand.u32 %s135, 1
          %s950 = smul.addr %s949, 12
          %s951 = scalar_lea.vmem [#allocation8], %s950
          %953 = dma.done %s948, 192
        $region56: #{tpu_custom_call.1} parent=51 // pred_fallthru
          _
      $region52: #{tpu_custom_call.1} parent=5 // pred_fallthru
        _
    $region6: #{tpu_custom_call.1} parent=1 // loop_footer
      %s20 = sadd.s32 1, %s16
    $region7: #{tpu_custom_call.1} parent=1 // loop_footer_branch
      %15 = sbr.rel target = $region3
    $region8: #{tpu_custom_call.1} parent=1 // loop_exit
      _
    %954 = vsyncpa [#allocation6], 1
    %s955 = scalar_lea.sflag [#allocation6], 1
    %956 = vsyncpa %s955, 1
    %957 = vsyncpa [#allocation7], 1
    %s958 = scalar_lea.sflag [#allocation7], 1
    %959 = vsyncpa %s958, 1
  %960 = vsyncmov [#allocation4]
  %s961 = vpop.sfrf %960
  %p962 = scmp.eq.s32.totalorder %s961, 0
  %p963 = pneg %p962
  %965 = shalt.err (%p963)

</llo_original>
